<compile_context>
chip_gen: v6e
topology: v6e:2x2x1
jax: 0.10.0
libtpu: 0.0.40
codegen_flags: <defaults>
</compile_context>

<pallas_src>
import functools

import numpy as np
import jax
import jax.numpy as jnp
from jax.experimental import pallas as pl
from jax.experimental.pallas import tpu as pltpu


def _round_up(x, m):
    return ((x + m - 1) // m) * m


def _gap_kernel(x_ref, o_ref, acc_ref, *, hw, tile_k, inv_hw, needs_mask):
    k = pl.program_id(1)

    @pl.when(k == 0)
    def _init():
        acc_ref[...] = jnp.zeros_like(acc_ref)

    acc_w = acc_ref.shape[-1]          # 128 lanes (or hw itself when hw < 128)
    kb = x_ref.shape[-1]               # block width along the spatial axis
    n_full = kb // acc_w
    rem = kb - n_full * acc_w

    def _chunk(start, width):
        # Slice each chunk straight from the ref and upcast per chunk
        # (keeps packed sub-32-bit loads; no full-tile f32 temp).
        c = x_ref[:, start:start + width].astype(jnp.float32)
        if needs_mask:
            col = (k * tile_k + start
                   + jax.lax.broadcasted_iota(jnp.int32, c.shape, 1))
            c = jnp.where(col < hw, c, 0.0)
        return c

    # Stage 1: lane-parallel VPU accumulation into the lane-dense accumulator.
    for i in range(n_full):
        acc_ref[...] += _chunk(i * acc_w, acc_w)
    if rem:
        acc_ref[:, :rem] += _chunk(n_full * acc_w, rem)

    # Stage 2 (last K step only): one cross-lane reduce + scale + cast + store.
    @pl.when(k == pl.num_programs(1) - 1)
    def _finalize():
        row_sum = jnp.sum(acc_ref[...], axis=-1, keepdims=True)
        o_ref[...] = (row_sum * inv_hw).astype(o_ref.dtype)


_K_CAP = 2048              # max lanes per spatial (K) tile
_TILE_BYTES = 12 << 20     # per-input-buffer VMEM budget (double-buffered)
_MAX_TILE_R = 16384        # keeps the (tile_r, 128) f32 accumulator <= 8 MiB
_VMEM_LIMIT = 40 << 20     # safe on v5e/v6e (128 MiB) and v7x (64 MiB physical)


def global_avg_pool(x):
    """Pallas TPU equivalent of x.view(*x.shape[:-2], -1).mean(-1)."""
    lead = x.shape[:-2]
    H, W = x.shape[-2], x.shape[-1]
    rows = int(np.prod(lead)) if lead else 1
    hw = H * W
    x2 = x.reshape(rows, hw)           # contiguous reshape: no HBM copy

    itemsize = jnp.dtype(x.dtype).itemsize
    sub = max(8, 32 // itemsize)       # sublane multiple: 8 f32, 16 bf16, 32 i8

    # ---- Spatial (K) tiling: no padding; mask the ragged tail in-kernel ----
    if hw <= _K_CAP:
        tile_k = hw                    # block == full dim -> exempt from 128 rule
    else:
        tile_k = _K_CAP
    needs_mask = (hw % tile_k) != 0
    grid_k = pl.cdiv(hw, tile_k)

    # ---- Row tiling: sized from the VMEM byte budget; no row padding ----
    if rows <= sub:
        tile_r = rows                  # block == full dim -> exempt from 8 rule
    else:
        budget_rows = max(sub, _TILE_BYTES // (tile_k * itemsize))
        tile_r = min(budget_rows, _MAX_TILE_R, _round_up(rows, sub))
        # Ensure >= 2 row blocks so both v7x TensorCores get work.
        tile_r = min(tile_r, _round_up(-(-rows // 2), sub))
        tile_r = max(sub, (tile_r // sub) * sub)
    grid_r = pl.cdiv(rows, tile_r)

    acc_w = min(128, tile_k)

    grid_spec = pltpu.PrefetchScalarGridSpec(
        num_scalar_prefetch=0,
        grid=(grid_r, grid_k),                          # reduction axis last
        in_specs=[pl.BlockSpec((tile_r, tile_k), lambda i, k: (i, k))],
        out_specs=pl.BlockSpec((tile_r, 1), lambda i, k: (i, 0)),
        scratch_shapes=[pltpu.VMEM((tile_r, acc_w), jnp.float32)],
    )

    out = pl.pallas_call(
        functools.partial(_gap_kernel, hw=hw, tile_k=tile_k,
                          inv_hw=1.0 / hw, needs_mask=needs_mask),
        out_shape=jax.ShapeDtypeStruct((rows, 1), x.dtype),
        grid_spec=grid_spec,
        compiler_params=pltpu.CompilerParams(
            dimension_semantics=("parallel", "arbitrary"),
            vmem_limit_bytes=_VMEM_LIMIT),
        cost_estimate=pl.CostEstimate(
            flops=rows * hw,
            transcendentals=0,
            bytes_accessed=rows * hw * itemsize + rows * itemsize),
    )(x2)

    return out[:, 0].reshape(lead)


if __name__ == "__main__":
    key = jax.random.PRNGKey(0)
    x = jax.random.normal(key, (2, 4, 16, 16), dtype=jnp.float32)

    y = global_avg_pool(x)
    jax.block_until_ready(y)

    # Reference check (plain JAX mirror of the PyTorch forward).
    y_ref = x.reshape(*x.shape[:-2], -1).mean(-1)
    assert y.shape == y_ref.shape == (2, 4)
    np.testing.assert_allclose(np.asarray(y), np.asarray(y_ref),
                               rtol=1e-6, atol=1e-6)

    print("KERNEL_OK")
</pallas_src>

<mosaic_0001>
module attributes {stable_mosaic.version = 11 : i64} {
  func.func @_gap_kernel(%arg0: i32, %arg1: i32, %arg2: memref<8x256xf32, #tpu.memory_space<vmem>>, %arg3: memref<8x1xf32, #tpu.memory_space<vmem>>, %arg4: memref<8x128xf32, #tpu.memory_space<vmem>>) attributes {dimension_semantics = [#tpu.dimension_semantics<parallel>, #tpu.dimension_semantics<arbitrary>], iteration_bounds = array<i64: 1, 1>, scalar_prefetch = 0 : i64, scratch_operands = 1 : i64, tpu.core_type = #tpu.core_type<tc>, window_params = [{transform_indices = @transform_0, window_bounds = array<i64: 8, 256>}, {transform_indices = @transform_1, window_bounds = array<i64: 8, 1>}]} {
    %c0_i32 = arith.constant 0 : i32
    %0 = arith.cmpi eq, %arg1, %c0_i32 : i32
    %1 = arith.extui %0 : i1 to i32
    %c0_i32_0 = arith.constant 0 : i32
    %2 = arith.cmpi ne, %1, %c0_i32_0 : i32
    scf.if %2 {
      %cst = arith.constant 0.000000e+00 : f32
      %14 = vector.broadcast %cst : f32 to vector<8x128xf32>
      %c0_13 = arith.constant 0 : index
      %c0_14 = arith.constant 0 : index
      %15 = vector.load %arg4[%c0_13, %c0_14] : memref<8x128xf32, #tpu.memory_space<vmem>>, vector<8x128xf32>
      tpu.vector_store %arg4[%c0_13, %c0_14], %14 {strides = array<i32>} : memref<8x128xf32, #tpu.memory_space<vmem>>, vector<8x128xf32>,
    } else {
    }
    %c0 = arith.constant 0 : index
    %c0_1 = arith.constant 0 : index
    %3 = vector.load %arg4[%c0, %c0_1] : memref<8x128xf32, #tpu.memory_space<vmem>>, vector<8x128xf32>
    %c0_2 = arith.constant 0 : index
    %c0_3 = arith.constant 0 : index
    %4 = vector.load %arg2[%c0_2, %c0_3] : memref<8x256xf32, #tpu.memory_space<vmem>>, vector<8x128xf32>
    %5 = arith.addf %3, %4 : vector<8x128xf32>
    %c0_4 = arith.constant 0 : index
    %c0_5 = arith.constant 0 : index
    %6 = vector.load %arg4[%c0_4, %c0_5] : memref<8x128xf32, #tpu.memory_space<vmem>>, vector<8x128xf32>
    tpu.vector_store %arg4[%c0_4, %c0_5], %5 {strides = array<i32>} : memref<8x128xf32, #tpu.memory_space<vmem>>, vector<8x128xf32>,
    %c0_6 = arith.constant 0 : index
    %c0_7 = arith.constant 0 : index
    %7 = vector.load %arg4[%c0_6, %c0_7] : memref<8x128xf32, #tpu.memory_space<vmem>>, vector<8x128xf32>
    %c0_8 = arith.constant 0 : index
    %c128 = arith.constant 128 : index
    %8 = vector.load %arg2[%c0_8, %c128] : memref<8x256xf32, #tpu.memory_space<vmem>>, vector<8x128xf32>
    %9 = arith.addf %7, %8 : vector<8x128xf32>
    %c0_9 = arith.constant 0 : index
    %c0_10 = arith.constant 0 : index
    %10 = vector.load %arg4[%c0_9, %c0_10] : memref<8x128xf32, #tpu.memory_space<vmem>>, vector<8x128xf32>
    tpu.vector_store %arg4[%c0_9, %c0_10], %9 {strides = array<i32>} : memref<8x128xf32, #tpu.memory_space<vmem>>, vector<8x128xf32>,
    %c0_i32_11 = arith.constant 0 : i32
    %11 = arith.cmpi eq, %arg1, %c0_i32_11 : i32
    %12 = arith.extui %11 : i1 to i32
    %c0_i32_12 = arith.constant 0 : i32
    %13 = arith.cmpi ne, %12, %c0_i32_12 : i32
    scf.if %13 {
      %c0_13 = arith.constant 0 : index
      %c0_14 = arith.constant 0 : index
      %14 = vector.load %arg4[%c0_13, %c0_14] : memref<8x128xf32, #tpu.memory_space<vmem>>, vector<8x128xf32>
      %cst = arith.constant dense<0.000000e+00> : vector<8xf32>
      %15 = vector.multi_reduction <add>, %14, %cst [1] : vector<8x128xf32> to vector<8xf32>
      %16 = vector.shape_cast %15 : vector<8xf32> to vector<8x1xf32>
      %cst_15 = arith.constant 3.906250e-03 : f32
      %17 = vector.broadcast %cst_15 : f32 to vector<8x1xf32>
      %18 = arith.mulf %16, %17 : vector<8x1xf32>
      %c0_16 = arith.constant 0 : index
      %c0_17 = arith.constant 0 : index
      %19 = vector.load %arg3[%c0_16, %c0_17] : memref<8x1xf32, #tpu.memory_space<vmem>>, vector<8x1xf32>
      tpu.vector_store %arg3[%c0_16, %c0_17], %18 {strides = array<i32>} : memref<8x1xf32, #tpu.memory_space<vmem>>, vector<8x1xf32>,
    } else {
    }
    return
  }
  func.func @transform_0(%arg0: i32, %arg1: i32) -> (i32, i32) {
    %c0_i32 = arith.constant 0 : i32
    return %arg0, %arg1 : i32, i32
  }
  func.func @transform_1(%arg0: i32, %arg1: i32) -> (i32, i32) {
    %c0_i32 = arith.constant 0 : i32
    %c0_i32_0 = arith.constant 0 : i32
    return %arg0, %c0_i32 : i32, i32
  }
}

</mosaic_0001>

<llo_original>
// kernel: tpu_custom_call.1
$region0: #{tpu_custom_call.1}
  #allocation0 [shape = 'u32[]', space=smem, size = 0x4, offset = 0x4, fixed_abs, tag = 'smem constant byte address 0x4 - core index']
  #allocation1 [shape = 'u32[144,128]{1,0:T(1,128)}', space=vmem, size = 0x12000, scoped, tag = 'internal scratch']
  #allocation2 [shape = 'f32[8,128]{1,0:T(8,128)}', space=vmem, size = 0x1000, scoped, tag = 'scratch operand']
  %s0 = inlined_call_operand.hbm [shape: f32[8,256], index: 0, kind: input, shape index: {}]
  %s1 = inlined_call_operand.vmem [shape: f32[8,1], index: 1, kind: output, shape index: {}]
  %s2 = sld [smem:[#allocation0]]
  $region26: #{tpu_custom_call.1} parent=0
    _
  %s4 = ssub.s32 1, %s2
  %s5 = scalar_select 0, %s4, %s2
  $region1: #{tpu_custom_call.1} parent=0
    #allocation3 [shape = 'u8[8192]{0}', space=vmem, size = 0x2000, scoped, tag = 'input window, operand 0, single buffered']
    #allocation4 [shape = 's32[1]{0}', space=sflag, size = 0x4, scoped, tag = 'scoped memory for tpu_custom_call.1']
    %6 = vsyncpa [#allocation4], 0
    // Predicated region
    $region2: #{tpu_custom_call.1} parent=1 // pred_check
      _
    $region3: #{tpu_custom_call.1} parent=1 // pred_check_branch
      %8 = sbr.rel (0) target = $region5
    $region4: #{tpu_custom_call.1} parent=1 // pred_region
      %s10 = ssub.s32 256, 256
      %11 = vsyncadd [#allocation4], %s10
      %s13 = sshll.u32 [#allocation3], 4
      %s14 = int_to_ptr.vmem [resolvable:$true] %s13
      %16 = dma.hbm_to_vmem [thread:$0]  %s0, 256, %s14, [#allocation4]
    $region5: #{tpu_custom_call.1} parent=1 // pred_fallthru
      _
    // Predicated region
    $region6: #{tpu_custom_call.1} parent=1 // pred_check
      _
    $region7: #{tpu_custom_call.1} parent=1 // pred_check_branch
      %18 = sbr.rel (0) target = $region9
    $region8: #{tpu_custom_call.1} parent=1 // pred_region
      %19 = dma.done [#allocation4], 256
    $region9: #{tpu_custom_call.1} parent=1 // pred_fallthru
      _
    %p20 = scmp.eq.s32.totalorder 0, 0
    // Predicated region
    $region10: #{tpu_custom_call.1} parent=1 // pred_check
      %p21 = pneg %p20
    $region11: #{tpu_custom_call.1} parent=1 // pred_check_branch
      %23 = sbr.rel (%p21) target = $region13
    $region12: #{tpu_custom_call.1} parent=1 // pred_region
      %24 = vst [vmem:[#allocation2] sm:$0xff] 0.0
    $region13: #{tpu_custom_call.1} parent=1 // pred_fallthru
      _
    %v25 = vld [vmem:[#allocation2] sm:$0xff]
    %v26 = vld [vmem:[#allocation3] sm:$0xff]
    %v27 = vadd.f32 %v25, %v26
    %28 = vst [vmem:[#allocation2] sm:$0xff] %v27
    %v29 = vld [vmem:[#allocation2] sm:$0xff]
    %v30 = vld [vmem:[#allocation3 + $0x8] sm:$0xff]
    %v31 = vadd.f32 %v29, %v30
    %32 = vst [vmem:[#allocation2] sm:$0xff] %v31
    // Predicated region
    $region14: #{tpu_custom_call.1} parent=1 // pred_check
      %p33 = pneg %p20
    $region15: #{tpu_custom_call.1} parent=1 // pred_check_branch
      %35 = sbr.rel (%p33) target = $region17
    $region16: #{tpu_custom_call.1} parent=1 // pred_region
      %v36 = vld [vmem:[#allocation2] sm:$0xff]
      %37 = vadd.xlane.f32.xlu0 %v36
      %v38 = vpop.xlane.xlu0 %37
      %v39 = vmul.f32 %v38, 0.00390625
      %vm40 = vcmask 7168
      %41 = vst.msk [vmem:[%s1] sm:$0xff] %vm40, %v39
    $region17: #{tpu_custom_call.1} parent=1 // pred_fallthru
      _
    // Predicated region
    $region18: #{tpu_custom_call.1} parent=1 // pred_check
      _
    $region19: #{tpu_custom_call.1} parent=1 // pred_check_branch
      %43 = sbr.rel (0) target = $region21
    $region20: #{tpu_custom_call.1} parent=1 // pred_region
      _
    $region21: #{tpu_custom_call.1} parent=1 // pred_fallthru
      _
    // Predicated region
    $region22: #{tpu_custom_call.1} parent=1 // pred_check
      _
    $region23: #{tpu_custom_call.1} parent=1 // pred_check_branch
      %45 = sbr.rel (0) target = $region25
    $region24: #{tpu_custom_call.1} parent=1 // pred_region
      _
    $region25: #{tpu_custom_call.1} parent=1 // pred_fallthru
      _
    %46 = vsyncpa [#allocation4], 1

</llo_original>
